<compile_context>
chip_gen: v7x
topology: tpu7x:2x2x1
jax: 0.10.0
libtpu: 0.0.40
codegen_flags: <defaults>
</compile_context>

<pallas_src>
import jax
import jax.numpy as jnp
import numpy as np
from jax.experimental import pallas as pl
from jax.experimental.pallas import tpu as pltpu

# ---- small synthetic dims consistent with the module's constructor ----
B = 2
C_IN, H, W = 4, 16, 16      # x: (B, C_IN, H, W) NCHW at the API boundary
C_FEAT = 8                  # conv-stem output channels
INPUT_DIM = 32              # CuMix input_dim (2048 in the original)
SEM_DIM = 16                # CuMix semantic_dim (300 in the original)
N_SEEN = 10                 # len(seen_classes)
N_UNSEEN = 5                # len(unseen_classes)

IN_PAD = ((INPUT_DIM + 127) // 128) * 128      # lane-dense feature width


def _pad_last(a, to):
    pad = to - a.shape[-1]
    if pad == 0:
        return a
    return jnp.pad(a, [(0, 0)] * (a.ndim - 1) + [(0, pad)])


def cumix_kernel(xcol_ref, wconv_ref, bconv_ref, pool_ref,
                 wfeat_ref, bfeat_ref, wpc_ref, bpc_ref,
                 clf_ref, feat_ref):
    """Fused CuMix forward for the whole batch: 4 dense MXU matmuls, f32
    accumulation/elementwise, lane-dense stores. No per-sample loop."""
    # Conv stem as one im2col matmul (bf16 operands, f32 accumulate) + ReLU.
    conv = jnp.dot(xcol_ref[...], wconv_ref[...],
                   preferred_element_type=jnp.float32)          # (B*H*W, C_FEAT)
    conv = jnp.maximum(conv + bconv_ref[...], 0.0)
    # Global average pool: block-diagonal (B, B*H*W) pooling matrix @ conv.
    gap = jnp.dot(pool_ref[...], conv,
                  preferred_element_type=jnp.float32)           # (B, C_FEAT)
    # Feature head ("backbone" output); padded to IN_PAD lanes (extra cols 0).
    feat = jnp.dot(gap.astype(jnp.bfloat16), wfeat_ref[...],
                   preferred_element_type=jnp.float32) + bfeat_ref[...]
    feat = jnp.maximum(feat, 0.0)                               # (B, IN_PAD)
    feat_ref[...] = feat
    # Folded semantic projector + UnitClassifier (bias of projector folded
    # through the L2-normalized class-attribute matmul as well).
    clf_ref[...] = jnp.dot(feat.astype(jnp.bfloat16), wpc_ref[...],
                           preferred_element_type=jnp.float32) + bpc_ref[...]


def cumix_forward(x_nchw, params, mode="train"):
    """Wrapper: NCHW -> NHWC, pad + im2col (glue), fold/pad weights, one
    pallas_call, slice padded lanes back."""
    x = jnp.transpose(x_nchw, (0, 2, 3, 1)).astype(jnp.bfloat16)   # NHWC, bf16
    xp = jnp.pad(x, ((0, 0), (1, 1), (1, 1), (0, 0)))              # 'SAME' 3x3
    bsz = x.shape[0]
    # im2col glue: (B*H*W, 9*C_IN); order (kh, kw, c) matches w_conv reshape.
    cols = [xp[:, kh:kh + H, kw:kw + W, :] for kh in range(3) for kw in range(3)]
    x_col = jnp.concatenate(cols, axis=-1).reshape(bsz * H * W, 9 * C_IN)
    w_col = params["w_conv"].reshape(9 * C_IN, C_FEAT).astype(jnp.bfloat16)

    # Block-diagonal average-pool matrix (f32; 1/(H*W) is exact).
    pool = jnp.repeat(jnp.eye(bsz, dtype=jnp.float32), H * W, axis=1) / float(H * W)

    wcls = params["w_cls_train"] if mode == "train" else params["w_cls_test"]
    n_cls = wcls.shape[-1]
    cls_pad = ((n_cls + 127) // 128) * 128

    # Fold projector + UnitClassifier offline (no nonlinearity in between).
    w_pc = params["w_proj"] @ wcls                               # (INPUT_DIM, n_cls)
    b_pc = params["b_proj"] @ wcls                               # (1, n_cls)

    # Lane-dense padding of both heads (zero-padded -> results unchanged).
    w_feat_p = _pad_last(params["w_feat"], IN_PAD).astype(jnp.bfloat16)
    b_feat_p = _pad_last(params["b_feat"], IN_PAD)
    w_pc_p = _pad_last(jnp.pad(w_pc, ((0, IN_PAD - INPUT_DIM), (0, 0))),
                       cls_pad).astype(jnp.bfloat16)
    b_pc_p = _pad_last(b_pc, cls_pad)
    b_conv = params["b_conv"]

    flops = 2 * (bsz * H * W * 9 * C_IN * C_FEAT      # conv matmul
                 + bsz * bsz * H * W * C_FEAT         # pooling matmul
                 + bsz * C_FEAT * IN_PAD              # feature head
                 + bsz * IN_PAD * cls_pad)            # folded proj+classifier
    bytes_accessed = (
        (x_col.size + w_col.size + w_feat_p.size + w_pc_p.size) * 2
        + (pool.size + b_conv.size + b_feat_p.size + b_pc_p.size) * 4
        + (bsz * cls_pad + bsz * IN_PAD) * 4)

    vmem = pl.BlockSpec(memory_space=pltpu.MemorySpace.VMEM)
    clf_p, feat_p = pl.pallas_call(
        cumix_kernel,
        out_shape=(jax.ShapeDtypeStruct((bsz, cls_pad), jnp.float32),
                   jax.ShapeDtypeStruct((bsz, IN_PAD), jnp.float32)),
        in_specs=[vmem] * 8,
        out_specs=(vmem, vmem),
        cost_estimate=pl.CostEstimate(flops=flops, transcendentals=0,
                                      bytes_accessed=bytes_accessed),
    )(x_col, w_col, b_conv, pool, w_feat_p, b_feat_p, w_pc_p, b_pc_p)
    return clf_p[:, :n_cls], feat_p[:, :INPUT_DIM]


def make_params(key):
    ks = jax.random.split(key, 8)
    w_conv = 0.1 * jax.random.normal(ks[0], (3, 3, C_IN, C_FEAT), jnp.float32)
    b_conv = 0.1 * jax.random.normal(ks[1], (1, C_FEAT), jnp.float32)
    w_feat = 0.1 * jax.random.normal(ks[2], (C_FEAT, INPUT_DIM), jnp.float32)
    b_feat = 0.1 * jax.random.normal(ks[3], (1, INPUT_DIM), jnp.float32)
    w_proj = 0.1 * jax.random.normal(ks[4], (INPUT_DIM, SEM_DIM), jnp.float32)
    b_proj = 0.1 * jax.random.normal(ks[5], (1, SEM_DIM), jnp.float32)
    # UnitClassifier weights: rows = L2-normalized class attribute embeddings.
    attr_seen = jax.random.normal(ks[6], (N_SEEN, SEM_DIM), jnp.float32)
    attr_unseen = jax.random.normal(ks[7], (N_UNSEEN, SEM_DIM), jnp.float32)
    w_cls_train = (attr_seen / jnp.linalg.norm(attr_seen, axis=1, keepdims=True)).T
    w_cls_test = (attr_unseen / jnp.linalg.norm(attr_unseen, axis=1, keepdims=True)).T
    return dict(w_conv=w_conv, b_conv=b_conv, w_feat=w_feat, b_feat=b_feat,
                w_proj=w_proj, b_proj=b_proj,
                w_cls_train=w_cls_train, w_cls_test=w_cls_test)


def reference_forward(x_nchw, params, mode="train"):
    """Pure-JAX f32 reference for numerical validation."""
    x = jnp.transpose(x_nchw, (0, 2, 3, 1)).astype(jnp.float32)
    y = jax.lax.conv_general_dilated(
        x, params["w_conv"], window_strides=(1, 1), padding="SAME",
        dimension_numbers=("NHWC", "HWIO", "NHWC"))
    y = jnp.maximum(y + params["b_conv"][0], 0.0)
    gap = y.mean(axis=(1, 2))
    feat = jnp.maximum(gap @ params["w_feat"] + params["b_feat"][0], 0.0)
    sem = feat @ params["w_proj"] + params["b_proj"][0]
    wcls = params["w_cls_train"] if mode == "train" else params["w_cls_test"]
    return sem @ wcls, feat


if __name__ == "__main__":
    key = jax.random.PRNGKey(0)
    kx, kp = jax.random.split(key)
    x = jax.random.normal(kx, (B, C_IN, H, W), jnp.float32)   # NCHW like PyTorch
    params = make_params(kp)

    clf_out, feat = cumix_forward(x, params, mode="train")
    jax.block_until_ready((clf_out, feat))

    clf_ref, feat_ref = reference_forward(x, params, mode="train")
    # bf16 matmul operands -> relaxed (bf16-appropriate) tolerance vs f32 ref.
    np.testing.assert_allclose(np.asarray(clf_out), np.asarray(clf_ref),
                               rtol=2e-2, atol=2e-2)
    np.testing.assert_allclose(np.asarray(feat), np.asarray(feat_ref),
                               rtol=2e-2, atol=2e-2)
    print("KERNEL_OK")
</pallas_src>

<mosaic_0001>
module attributes {stable_mosaic.version = 11 : i64} {
  func.func @cumix_kernel(%arg0: memref<512x36xbf16, #tpu.memory_space<vmem>>, %arg1: memref<36x8xbf16, #tpu.memory_space<vmem>>, %arg2: memref<1x8xf32, #tpu.memory_space<vmem>>, %arg3: memref<2x512xf32, #tpu.memory_space<vmem>>, %arg4: memref<8x128xbf16, #tpu.memory_space<vmem>>, %arg5: memref<1x128xf32, #tpu.memory_space<vmem>>, %arg6: memref<128x128xbf16, #tpu.memory_space<vmem>>, %arg7: memref<1x128xf32, #tpu.memory_space<vmem>>, %arg8: memref<2x128xf32, #tpu.memory_space<vmem>>, %arg9: memref<2x128xf32, #tpu.memory_space<vmem>>) attributes {dimension_semantics = [], scalar_prefetch = 0 : i64, scratch_operands = 0 : i64, tpu.core_type = #tpu.core_type<tc>} {
    %c0 = arith.constant 0 : index
    %c0_0 = arith.constant 0 : index
    %0 = vector.load %arg0[%c0, %c0_0] : memref<512x36xbf16, #tpu.memory_space<vmem>>, vector<512x36xbf16>
    %c0_1 = arith.constant 0 : index
    %c0_2 = arith.constant 0 : index
    %1 = vector.load %arg1[%c0_1, %c0_2] : memref<36x8xbf16, #tpu.memory_space<vmem>>, vector<36x8xbf16>
    %cst = arith.constant dense<0.000000e+00> : vector<512x8xf32>
    %2 = tpu.matmul %0, %1, %cst {dimension_numbers = #tpu.dot_dimension_numbers<[1], [0], [0], [1], [0, 0, 1, 1], [], []>} : vector<512x36xbf16>, vector<36x8xbf16>, vector<512x8xf32> -> vector<512x8xf32>
    %c0_3 = arith.constant 0 : index
    %c0_4 = arith.constant 0 : index
    %3 = vector.load %arg2[%c0_3, %c0_4] : memref<1x8xf32, #tpu.memory_space<vmem>>, vector<1x8xf32>
    %4 = vector.broadcast %3 : vector<1x8xf32> to vector<512x8xf32>
    %5 = arith.addf %2, %4 : vector<512x8xf32>
    %cst_5 = arith.constant 0.000000e+00 : f32
    %6 = vector.broadcast %cst_5 : f32 to vector<512x8xf32>
    %7 = arith.maximumf %5, %6 : vector<512x8xf32>
    %c0_6 = arith.constant 0 : index
    %c0_7 = arith.constant 0 : index
    %8 = vector.load %arg3[%c0_6, %c0_7] : memref<2x512xf32, #tpu.memory_space<vmem>>, vector<2x512xf32>
    %cst_8 = arith.constant dense<0.000000e+00> : vector<2x8xf32>
    %9 = tpu.matmul %8, %7, %cst_8 {dimension_numbers = #tpu.dot_dimension_numbers<[1], [0], [0], [1], [0, 0, 1, 1], [], []>} : vector<2x512xf32>, vector<512x8xf32>, vector<2x8xf32> -> vector<2x8xf32>
    %10 = arith.truncf %9 : vector<2x8xf32> to vector<2x8xbf16>
    %c0_9 = arith.constant 0 : index
    %c0_10 = arith.constant 0 : index
    %11 = vector.load %arg4[%c0_9, %c0_10] : memref<8x128xbf16, #tpu.memory_space<vmem>>, vector<8x128xbf16>
    %cst_11 = arith.constant dense<0.000000e+00> : vector<2x128xf32>
    %12 = tpu.matmul %10, %11, %cst_11 {dimension_numbers = #tpu.dot_dimension_numbers<[1], [0], [0], [1], [0, 0, 1, 1], [], []>} : vector<2x8xbf16>, vector<8x128xbf16>, vector<2x128xf32> -> vector<2x128xf32>
    %c0_12 = arith.constant 0 : index
    %c0_13 = arith.constant 0 : index
    %13 = vector.load %arg5[%c0_12, %c0_13] : memref<1x128xf32, #tpu.memory_space<vmem>>, vector<1x128xf32>
    %14 = vector.broadcast %13 : vector<1x128xf32> to vector<2x128xf32>
    %15 = arith.addf %12, %14 : vector<2x128xf32>
    %cst_14 = arith.constant 0.000000e+00 : f32
    %16 = vector.broadcast %cst_14 : f32 to vector<2x128xf32>
    %17 = arith.maximumf %15, %16 : vector<2x128xf32>
    %c0_15 = arith.constant 0 : index
    %c0_16 = arith.constant 0 : index
    %18 = vector.load %arg9[%c0_15, %c0_16] : memref<2x128xf32, #tpu.memory_space<vmem>>, vector<2x128xf32>
    tpu.vector_store %arg9[%c0_15, %c0_16], %17 {strides = array<i32>} : memref<2x128xf32, #tpu.memory_space<vmem>>, vector<2x128xf32>,
    %19 = arith.truncf %17 : vector<2x128xf32> to vector<2x128xbf16>
    %c0_17 = arith.constant 0 : index
    %c0_18 = arith.constant 0 : index
    %20 = vector.load %arg6[%c0_17, %c0_18] : memref<128x128xbf16, #tpu.memory_space<vmem>>, vector<128x128xbf16>
    %cst_19 = arith.constant dense<0.000000e+00> : vector<2x128xf32>
    %21 = tpu.matmul %19, %20, %cst_19 {dimension_numbers = #tpu.dot_dimension_numbers<[1], [0], [0], [1], [0, 0, 1, 1], [], []>} : vector<2x128xbf16>, vector<128x128xbf16>, vector<2x128xf32> -> vector<2x128xf32>
    %c0_20 = arith.constant 0 : index
    %c0_21 = arith.constant 0 : index
    %22 = vector.load %arg7[%c0_20, %c0_21] : memref<1x128xf32, #tpu.memory_space<vmem>>, vector<1x128xf32>
    %23 = vector.broadcast %22 : vector<1x128xf32> to vector<2x128xf32>
    %24 = arith.addf %21, %23 : vector<2x128xf32>
    %c0_22 = arith.constant 0 : index
    %c0_23 = arith.constant 0 : index
    %25 = vector.load %arg8[%c0_22, %c0_23] : memref<2x128xf32, #tpu.memory_space<vmem>>, vector<2x128xf32>
    tpu.vector_store %arg8[%c0_22, %c0_23], %24 {strides = array<i32>} : memref<2x128xf32, #tpu.memory_space<vmem>>, vector<2x128xf32>,
    return
  }
}

</mosaic_0001>

<llo_original>
// kernel: tpu_custom_call.1
$region0: #{tpu_custom_call.1}
  #allocation0 [shape = 'u32[]', space=smem, size = 0x4, offset = 0x4, fixed_abs, tag = 'smem constant byte address 0x4 - core index']
  #allocation1 [shape = 'u32[144,128]{1,0:T(1,128)}', space=vmem, size = 0x12000, scoped, tag = 'internal scratch']
  %s0 = inlined_call_operand.vmem [shape: bf16[512,36], index: 0, kind: input, shape index: {}]
  %s1 = inlined_call_operand.vmem [shape: bf16[36,8], index: 1, kind: input, shape index: {}]
  %s2 = inlined_call_operand.vmem [shape: f32[1,8], index: 2, kind: input, shape index: {}]
  %s3 = inlined_call_operand.vmem [shape: f32[2,512], index: 3, kind: input, shape index: {}]
  %s4 = inlined_call_operand.vmem [shape: bf16[8,128], index: 4, kind: input, shape index: {}]
  %s5 = inlined_call_operand.vmem [shape: f32[1,128], index: 5, kind: input, shape index: {}]
  %s6 = inlined_call_operand.vmem [shape: bf16[128,128], index: 6, kind: input, shape index: {}]
  %s7 = inlined_call_operand.vmem [shape: f32[1,128], index: 7, kind: input, shape index: {}]
  %s8 = inlined_call_operand.hbm [shape: f32[2,128], index: 8, kind: output, shape index: {0}]
  %s9 = inlined_call_operand.hbm [shape: f32[2,128], index: 9, kind: output, shape index: {1}]
  %10 = xla_tuple %s8, %s9
  %s11 = sld [smem:[#allocation0]]
  $region50: #{tpu_custom_call.1} parent=0
    _
  %s13 = ssub.s32 1, %s11
  %s14 = scalar_select 0, %s13, %s11
  $region1: #{tpu_custom_call.1} parent=0
    #allocation2 [shape = 'u8[1024]{0}', space=vmem, size = 0x400, scoped, tag = 'output window, operand 0, single buffered']
    #allocation3 [shape = 's32[1]{0}', space=sflag, size = 0x4, scoped, tag = 'scoped memory for tpu_custom_call.1']
    #allocation4 [shape = 'u8[1024]{0}', space=vmem, size = 0x400, scoped, tag = 'output window, operand 1, single buffered']
    #allocation5 [shape = 's32[1]{0}', space=sflag, size = 0x4, scoped, tag = 'scoped memory for tpu_custom_call.1']
    %15 = vsyncpa [#allocation3], 0
    %16 = vsyncpa [#allocation5], 0
    // Predicated region
    $region2: #{tpu_custom_call.1} parent=1 // pred_check
      _
    $region3: #{tpu_custom_call.1} parent=1 // pred_check_branch
      %18 = sbr.rel (0) target = $region5
    $region4: #{tpu_custom_call.1} parent=1 // pred_region
      _
    $region5: #{tpu_custom_call.1} parent=1 // pred_fallthru
      _
    // Predicated region
    $region6: #{tpu_custom_call.1} parent=1 // pred_check
      _
    $region7: #{tpu_custom_call.1} parent=1 // pred_check_branch
      %20 = sbr.rel (0) target = $region9
    $region8: #{tpu_custom_call.1} parent=1 // pred_region
      _
    $region9: #{tpu_custom_call.1} parent=1 // pred_fallthru
      _
    // Predicated region
    $region10: #{tpu_custom_call.1} parent=1 // pred_check
      _
    $region11: #{tpu_custom_call.1} parent=1 // pred_check_branch
      %22 = sbr.rel (0) target = $region13
    $region12: #{tpu_custom_call.1} parent=1 // pred_region
      _
    $region13: #{tpu_custom_call.1} parent=1 // pred_fallthru
      _
    // Predicated region
    $region14: #{tpu_custom_call.1} parent=1 // pred_check
      _
    $region15: #{tpu_custom_call.1} parent=1 // pred_check_branch
      %24 = sbr.rel (0) target = $region17
    $region16: #{tpu_custom_call.1} parent=1 // pred_region
      _
    $region17: #{tpu_custom_call.1} parent=1 // pred_fallthru
      _
    // Predicated region
    $region18: #{tpu_custom_call.1} parent=1 // pred_check
      _
    $region19: #{tpu_custom_call.1} parent=1 // pred_check_branch
      %26 = sbr.rel (0) target = $region21
    $region20: #{tpu_custom_call.1} parent=1 // pred_region
      _
    $region21: #{tpu_custom_call.1} parent=1 // pred_fallthru
      _
    // Predicated region
    $region22: #{tpu_custom_call.1} parent=1 // pred_check
      _
    $region23: #{tpu_custom_call.1} parent=1 // pred_check_branch
      %28 = sbr.rel (0) target = $region25
    $region24: #{tpu_custom_call.1} parent=1 // pred_region
      _
    $region25: #{tpu_custom_call.1} parent=1 // pred_fallthru
      _
    // Predicated region
    $region26: #{tpu_custom_call.1} parent=1 // pred_check
      _
    $region27: #{tpu_custom_call.1} parent=1 // pred_check_branch
      %30 = sbr.rel (0) target = $region29
    $region28: #{tpu_custom_call.1} parent=1 // pred_region
      _
    $region29: #{tpu_custom_call.1} parent=1 // pred_fallthru
      _
    // Predicated region
    $region30: #{tpu_custom_call.1} parent=1 // pred_check
      _
    $region31: #{tpu_custom_call.1} parent=1 // pred_check_branch
      %32 = sbr.rel (0) target = $region33
    $region32: #{tpu_custom_call.1} parent=1 // pred_region
      _
    $region33: #{tpu_custom_call.1} parent=1 // pred_fallthru
      _
    %v34 = vld [vmem:[%s0] sm:$0xf]
    %v35 = vld [vmem:[%s0 + $0x4] sm:$0xf]
    %v36 = vld [vmem:[%s0 + $0x8] sm:$0xf]
    %v37 = vld [vmem:[%s0 + $0xc] sm:$0xf]
    %v38 = vld [vmem:[%s0 + $0x10] sm:$0xf]
    %v39 = vld [vmem:[%s0 + $0x14] sm:$0xf]
    %v40 = vld [vmem:[%s0 + $0x18] sm:$0xf]
    %v41 = vld [vmem:[%s0 + $0x1c] sm:$0xf]
    %v42 = vld [vmem:[%s0 + $0x20] sm:$0xf]
    %v43 = vld [vmem:[%s0 + $0x24] sm:$0xf]
    %v44 = vld [vmem:[%s0 + $0x28] sm:$0xf]
    %v45 = vld [vmem:[%s0 + $0x2c] sm:$0xf]
    %v46 = vld [vmem:[%s0 + $0x30] sm:$0xf]
    %v47 = vld [vmem:[%s0 + $0x34] sm:$0xf]
    %v48 = vld [vmem:[%s0 + $0x38] sm:$0xf]
    %v49 = vld [vmem:[%s0 + $0x3c] sm:$0xf]
    %v50 = vld [vmem:[%s0 + $0x40] sm:$0xf]
    %v51 = vld [vmem:[%s0 + $0x44] sm:$0xf]
    %v52 = vld [vmem:[%s0 + $0x48] sm:$0xf]
    %v53 = vld [vmem:[%s0 + $0x4c] sm:$0xf]
    %v54 = vld [vmem:[%s0 + $0x50] sm:$0xf]
    %v55 = vld [vmem:[%s0 + $0x54] sm:$0xf]
    %v56 = vld [vmem:[%s0 + $0x58] sm:$0xf]
    %v57 = vld [vmem:[%s0 + $0x5c] sm:$0xf]
    %v58 = vld [vmem:[%s0 + $0x60] sm:$0xf]
    %v59 = vld [vmem:[%s0 + $0x64] sm:$0xf]
    %v60 = vld [vmem:[%s0 + $0x68] sm:$0xf]
    %v61 = vld [vmem:[%s0 + $0x6c] sm:$0xf]
    %v62 = vld [vmem:[%s0 + $0x70] sm:$0xf]
    %v63 = vld [vmem:[%s0 + $0x74] sm:$0xf]
    %v64 = vld [vmem:[%s0 + $0x78] sm:$0xf]
    %v65 = vld [vmem:[%s0 + $0x7c] sm:$0xf]
    %v66 = vld [vmem:[%s0 + $0x80] sm:$0xf]
    %v67 = vld [vmem:[%s0 + $0x84] sm:$0xf]
    %v68 = vld [vmem:[%s0 + $0x88] sm:$0xf]
    %v69 = vld [vmem:[%s0 + $0x8c] sm:$0xf]
    %v70 = vld [vmem:[%s0 + $0x90] sm:$0xf]
    %v71 = vld [vmem:[%s0 + $0x94] sm:$0xf]
    %v72 = vld [vmem:[%s0 + $0x98] sm:$0xf]
    %v73 = vld [vmem:[%s0 + $0x9c] sm:$0xf]
    %v74 = vld [vmem:[%s0 + $0xa0] sm:$0xf]
    %v75 = vld [vmem:[%s0 + $0xa4] sm:$0xf]
    %v76 = vld [vmem:[%s0 + $0xa8] sm:$0xf]
    %v77 = vld [vmem:[%s0 + $0xac] sm:$0xf]
    %v78 = vld [vmem:[%s0 + $0xb0] sm:$0xf]
    %v79 = vld [vmem:[%s0 + $0xb4] sm:$0xf]
    %v80 = vld [vmem:[%s0 + $0xb8] sm:$0xf]
    %v81 = vld [vmem:[%s0 + $0xbc] sm:$0xf]
    %v82 = vld [vmem:[%s0 + $0xc0] sm:$0xf]
    %v83 = vld [vmem:[%s0 + $0xc4] sm:$0xf]
    %v84 = vld [vmem:[%s0 + $0xc8] sm:$0xf]
    %v85 = vld [vmem:[%s0 + $0xcc] sm:$0xf]
    %v86 = vld [vmem:[%s0 + $0xd0] sm:$0xf]
    %v87 = vld [vmem:[%s0 + $0xd4] sm:$0xf]
    %v88 = vld [vmem:[%s0 + $0xd8] sm:$0xf]
    %v89 = vld [vmem:[%s0 + $0xdc] sm:$0xf]
    %v90 = vld [vmem:[%s0 + $0xe0] sm:$0xf]
    %v91 = vld [vmem:[%s0 + $0xe4] sm:$0xf]
    %v92 = vld [vmem:[%s0 + $0xe8] sm:$0xf]
    %v93 = vld [vmem:[%s0 + $0xec] sm:$0xf]
    %v94 = vld [vmem:[%s0 + $0xf0] sm:$0xf]
    %v95 = vld [vmem:[%s0 + $0xf4] sm:$0xf]
    %v96 = vld [vmem:[%s0 + $0xf8] sm:$0xf]
    %v97 = vld [vmem:[%s0 + $0xfc] sm:$0xf]
    %v98 = vld [vmem:[%s1] sm:$0xf]
    %v99 = vld [vmem:[%s1 + $0x4] sm:$0xf]
    %v100 = vld [vmem:[%s1 + $0x8] sm:$0xf]
    %v101 = vld [vmem:[%s1 + $0xc] sm:$0xf]
    %v102 = vld [vmem:[%s1 + $0x10] sm:$0x3]
    %v103 = vld [vmem:[%s2] sm:$0x1]
    %v105 = vlaneseq
    %v106 = vshrl.u32 %v105, 7
    %v107 = vsub.s32 0, %v106
    %v108 = vrot.slane %v103, %v107
    %v174 = vunpack.c.l.b16 %v34
    %v175 = vunpack.c.l.b16 %v35
    %v176 = vunpack.c.l.b16 %v36
    %v177 = vunpack.c.l.b16 %v37
    %v178 = vunpack.c.l.b16 %v38
    %v179 = vunpack.c.l.b16 %v39
    %v180 = vunpack.c.l.b16 %v40
    %v181 = vunpack.c.l.b16 %v41
    %v182 = vunpack.c.l.b16 %v42
    %v183 = vunpack.c.l.b16 %v43
    %v184 = vunpack.c.l.b16 %v44
    %v185 = vunpack.c.l.b16 %v45
    %v186 = vunpack.c.l.b16 %v46
    %v187 = vunpack.c.l.b16 %v47
    %v188 = vunpack.c.l.b16 %v48
    %v189 = vunpack.c.l.b16 %v49
    %v190 = vunpack.c.l.b16 %v50
    %v191 = vunpack.c.l.b16 %v51
    %v192 = vunpack.c.l.b16 %v52
    %v193 = vunpack.c.l.b16 %v53
    %v194 = vunpack.c.l.b16 %v54
    %v195 = vunpack.c.l.b16 %v55
    %v196 = vunpack.c.l.b16 %v56
    %v197 = vunpack.c.l.b16 %v57
    %v198 = vunpack.c.l.b16 %v58
    %v199 = vunpack.c.l.b16 %v59
    %v200 = vunpack.c.l.b16 %v60
    %v201 = vunpack.c.l.b16 %v61
    %v202 = vunpack.c.l.b16 %v62
    %v203 = vunpack.c.l.b16 %v63
    %v204 = vunpack.c.l.b16 %v64
    %v205 = vunpack.c.l.b16 %v65
    %v206 = vunpack.c.l.b16 %v66
    %v207 = vunpack.c.l.b16 %v67
    %v208 = vunpack.c.l.b16 %v68
    %v209 = vunpack.c.l.b16 %v69
    %v210 = vunpack.c.l.b16 %v70
    %v211 = vunpack.c.l.b16 %v71
    %v212 = vunpack.c.l.b16 %v72
    %v213 = vunpack.c.l.b16 %v73
    %v214 = vunpack.c.l.b16 %v74
    %v215 = vunpack.c.l.b16 %v75
    %v216 = vunpack.c.l.b16 %v76
    %v217 = vunpack.c.l.b16 %v77
    %v218 = vunpack.c.l.b16 %v78
    %v219 = vunpack.c.l.b16 %v79
    %v220 = vunpack.c.l.b16 %v80
    %v221 = vunpack.c.l.b16 %v81
    %v222 = vunpack.c.l.b16 %v82
    %v223 = vunpack.c.l.b16 %v83
    %v224 = vunpack.c.l.b16 %v84
    %v225 = vunpack.c.l.b16 %v85
    %v226 = vunpack.c.l.b16 %v86
    %v227 = vunpack.c.l.b16 %v87
    %v228 = vunpack.c.l.b16 %v88
    %v229 = vunpack.c.l.b16 %v89
    %v230 = vunpack.c.l.b16 %v90
    %v231 = vunpack.c.l.b16 %v91
    %v232 = vunpack.c.l.b16 %v92
    %v233 = vunpack.c.l.b16 %v93
    %v234 = vunpack.c.l.b16 %v94
    %v235 = vunpack.c.l.b16 %v95
    %v236 = vunpack.c.l.b16 %v96
    %v237 = vunpack.c.l.b16 %v97
    %v238 = vpack.c.b16 %v175, %v174
    %v239 = vpack.c.b16 %v177, %v176
    %v240 = vpack.c.b16 %v179, %v178
    %v241 = vpack.c.b16 %v181, %v180
    %v242 = vpack.c.b16 %v183, %v182
    %v243 = vpack.c.b16 %v185, %v184
    %v244 = vpack.c.b16 %v187, %v186
    %v245 = vpack.c.b16 %v189, %v188
    %v246 = vpack.c.b16 %v191, %v190
    %v247 = vpack.c.b16 %v193, %v192
    %v248 = vpack.c.b16 %v195, %v194
    %v249 = vpack.c.b16 %v197, %v196
    %v250 = vpack.c.b16 %v199, %v198
    %v251 = vpack.c.b16 %v201, %v200
    %v252 = vpack.c.b16 %v203, %v202
    %v253 = vpack.c.b16 %v205, %v204
    %v254 = vpack.c.b16 %v207, %v206
    %v255 = vpack.c.b16 %v209, %v208
    %v256 = vpack.c.b16 %v211, %v210
    %v257 = vpack.c.b16 %v213, %v212
    %v258 = vpack.c.b16 %v215, %v214
    %v259 = vpack.c.b16 %v217, %v216
    %v260 = vpack.c.b16 %v219, %v218
    %v261 = vpack.c.b16 %v221, %v220
    %v262 = vpack.c.b16 %v223, %v222
    %v263 = vpack.c.b16 %v225, %v224
    %v264 = vpack.c.b16 %v227, %v226
    %v265 = vpack.c.b16 %v229, %v228
    %v266 = vpack.c.b16 %v231, %v230
    %v267 = vpack.c.b16 %v233, %v232
    %v268 = vpack.c.b16 %v235, %v234
    %v269 = vpack.c.b16 %v237, %v236
    %v275 = vunpack.c.l.b16 %v98
    %v276 = vunpack.c.l.b16 %v99
    %v277 = vunpack.c.l.b16 %v100
    %v278 = vunpack.c.l.b16 %v101
    %v279 = vunpack.c.l.b16 %v102
    %v280 = vpack.c.b16 %v276, %v275
    %v281 = vpack.c.b16 %v278, %v277
    %v282 = vpack.c.b16 %v279, %v279
    %vm285 = vcmask 293888
    %v287 = vsel %vm285, %v238, 0
    %v290 = vsel %vm285, %v239, 0
    %v293 = vsel %vm285, %v240, 0
    %v296 = vsel %vm285, %v241, 0
    %v299 = vsel %vm285, %v242, 0
    %v302 = vsel %vm285, %v243, 0
    %v305 = vsel %vm285, %v244, 0
    %v308 = vsel %vm285, %v245, 0
    %v311 = vsel %vm285, %v246, 0
    %v314 = vsel %vm285, %v247, 0
    %v317 = vsel %vm285, %v248, 0
    %v320 = vsel %vm285, %v249, 0
    %v323 = vsel %vm285, %v250, 0
    %v326 = vsel %vm285, %v251, 0
    %v329 = vsel %vm285, %v252, 0
    %v332 = vsel %vm285, %v253, 0
    %v335 = vsel %vm285, %v254, 0
    %v338 = vsel %vm285, %v255, 0
    %v341 = vsel %vm285, %v256, 0
    %v344 = vsel %vm285, %v257, 0
    %v347 = vsel %vm285, %v258, 0
    %v350 = vsel %vm285, %v259, 0
    %v353 = vsel %vm285, %v260, 0
    %v356 = vsel %vm285, %v261, 0
    %v359 = vsel %vm285, %v262, 0
    %v362 = vsel %vm285, %v263, 0
    %v365 = vsel %vm285, %v264, 0
    %v368 = vsel %vm285, %v265, 0
    %v371 = vsel %vm285, %v266, 0
    %v374 = vsel %vm285, %v267, 0
    %v377 = vsel %vm285, %v268, 0
    %v380 = vsel %vm285, %v269, 0
    %vm382 = vcmask 1041408
    %v384 = vsel %vm382, %v282, 0
    %386 = vmatprep.subr.bf16.mxu0 0
    %387 = vmatpush1.bf16.msra.mxu0 %v280
    %388 = vmatprep.subr.bf16.mxu0 0
    %389 = vmatpush1.bf16.msra.mxu0 %v281
    %390 = vmatprep.subr.bf16.mxu0 0
    %391 = vmatpush1.bf16.msra.mxu0 %v384
    %392 = vmatprep.subr.bf16.mxu0 0
    %393 = vmatpush1.bf16.msra.mxu0 0
    %394 = vmatprep.subr.bf16.mxu0 0
    %395 = vmatpush1.bf16.msra.mxu0 0
    %396 = vmatprep.subr.bf16.mxu0 0
    %397 = vmatpush1.bf16.msra.mxu0 0
    %398 = vmatprep.subr.bf16.mxu0 0
    %399 = vmatpush1.bf16.msra.mxu0 0
    %400 = vmatprep.subr.bf16.mxu0 0
    %401 = vmatpush1.bf16.msra.mxu0 0
    %402 = vmatprep.subr.bf16.mxu0 0
    %403 = vmatpush1.bf16.msra.mxu0 0
    %404 = vmatprep.subr.bf16.mxu0 0
    %405 = vmatpush1.bf16.msra.mxu0 0
    %406 = vmatprep.subr.bf16.mxu0 0
    %407 = vmatpush1.bf16.msra.mxu0 0
    %408 = vmatprep.subr.bf16.mxu0 0
    %409 = vmatpush1.bf16.msra.mxu0 0
    %410 = vmatprep.subr.bf16.mxu0 0
    %411 = vmatpush1.bf16.msra.mxu0 0
    %412 = vmatprep.subr.bf16.mxu0 0
    %413 = vmatpush1.bf16.msra.mxu0 0
    %414 = vmatprep.subr.bf16.mxu0 0
    %415 = vmatpush1.bf16.msra.mxu0 0
    %416 = vmatprep.subr.bf16.mxu0 0
    %417 = vmatpush1.bf16.msra.mxu0 0
    %418 = vmatprep.mubr.bf16.mxu0 0
    %419 = vmatmul.mubr.bf16.gmra.mrb[0].mxu0 %v287
    %v420 = vpop.f32.mrb[0].mxu0
    %v421 = vadd.f32 %v108, %v420
    %v422 = vpop.f32.mrb[0].mxu0
    %v423 = vpop.f32.mrb[0].mxu0
    %v424 = vadd.f32 %v108, %v423
    %v425 = vpop.f32.mrb[0].mxu0
    %426 = vmatprep.mubr.bf16.mxu0 0
    %427 = vmatmul.mubr.bf16.gmra.mrb[0].mxu0 %v290
    %v428 = vpop.f32.mrb[0].mxu0
    %v429 = vadd.f32 %v108, %v428
    %v430 = vpop.f32.mrb[0].mxu0
    %v431 = vpop.f32.mrb[0].mxu0
    %v432 = vadd.f32 %v108, %v431
    %v433 = vpop.f32.mrb[0].mxu0
    %434 = vmatprep.mubr.bf16.mxu0 0
    %435 = vmatmul.mubr.bf16.gmra.mrb[0].mxu0 %v293
    %v436 = vpop.f32.mrb[0].mxu0
    %v437 = vadd.f32 %v108, %v436
    %v438 = vpop.f32.mrb[0].mxu0
    %v439 = vpop.f32.mrb[0].mxu0
    %v440 = vadd.f32 %v108, %v439
    %v441 = vpop.f32.mrb[0].mxu0
    %442 = vmatprep.mubr.bf16.mxu0 0
    %443 = vmatmul.mubr.bf16.gmra.mrb[0].mxu0 %v296
    %v444 = vpop.f32.mrb[0].mxu0
    %v445 = vadd.f32 %v108, %v444
    %v446 = vpop.f32.mrb[0].mxu0
    %v447 = vpop.f32.mrb[0].mxu0
    %v448 = vadd.f32 %v108, %v447
    %v449 = vpop.f32.mrb[0].mxu0
    %450 = vmatprep.mubr.bf16.mxu0 0
    %451 = vmatmul.mubr.bf16.gmra.mrb[0].mxu0 %v299
    %v452 = vpop.f32.mrb[0].mxu0
    %v453 = vadd.f32 %v108, %v452
    %v454 = vpop.f32.mrb[0].mxu0
    %v455 = vpop.f32.mrb[0].mxu0
    %v456 = vadd.f32 %v108, %v455
    %v457 = vpop.f32.mrb[0].mxu0
    %458 = vmatprep.mubr.bf16.mxu0 0
    %459 = vmatmul.mubr.bf16.gmra.mrb[0].mxu0 %v302
    %v460 = vpop.f32.mrb[0].mxu0
    %v461 = vadd.f32 %v108, %v460
    %v462 = vpop.f32.mrb[0].mxu0
    %v463 = vpop.f32.mrb[0].mxu0
    %v464 = vadd.f32 %v108, %v463
    %v465 = vpop.f32.mrb[0].mxu0
    %466 = vmatprep.mubr.bf16.mxu0 0
    %467 = vmatmul.mubr.bf16.gmra.mrb[0].mxu0 %v305
    %v468 = vpop.f32.mrb[0].mxu0
    %v469 = vadd.f32 %v108, %v468
    %v470 = vpop.f32.mrb[0].mxu0
    %v471 = vpop.f32.mrb[0].mxu0
    %v472 = vadd.f32 %v108, %v471
    %v473 = vpop.f32.mrb[0].mxu0
    %474 = vmatprep.mubr.bf16.mxu0 0
    %475 = vmatmul.mubr.bf16.gmra.mrb[0].mxu0 %v308
    %v476 = vpop.f32.mrb[0].mxu0
    %v477 = vadd.f32 %v108, %v476
    %v478 = vpop.f32.mrb[0].mxu0
    %v479 = vpop.f32.mrb[0].mxu0
    %v480 = vadd.f32 %v108, %v479
    %v481 = vpop.f32.mrb[0].mxu0
    %482 = vmatprep.mubr.bf16.mxu0 0
    %483 = vmatmul.mubr.bf16.gmra.mrb[0].mxu0 %v311
    %v484 = vpop.f32.mrb[0].mxu0
    %v485 = vadd.f32 %v108, %v484
    %v486 = vpop.f32.mrb[0].mxu0
    %v487 = vpop.f32.mrb[0].mxu0
    %v488 = vadd.f32 %v108, %v487
    %v489 = vpop.f32.mrb[0].mxu0
    %490 = vmatprep.mubr.bf16.mxu0 0
    %491 = vmatmul.mubr.bf16.gmra.mrb[0].mxu0 %v314
    %v492 = vpop.f32.mrb[0].mxu0
    %v493 = vadd.f32 %v108, %v492
    %v494 = vpop.f32.mrb[0].mxu0
    %v495 = vpop.f32.mrb[0].mxu0
    %v496 = vadd.f32 %v108, %v495
    %v497 = vpop.f32.mrb[0].mxu0
    %498 = vmatprep.mubr.bf16.mxu0 0
    %499 = vmatmul.mubr.bf16.gmra.mrb[0].mxu0 %v317
    %v500 = vpop.f32.mrb[0].mxu0
    %v501 = vadd.f32 %v108, %v500
    %v502 = vpop.f32.mrb[0].mxu0
    %v503 = vpop.f32.mrb[0].mxu0
    %v504 = vadd.f32 %v108, %v503
    %v505 = vpop.f32.mrb[0].mxu0
    %506 = vmatprep.mubr.bf16.mxu0 0
    %507 = vmatmul.mubr.bf16.gmra.mrb[0].mxu0 %v320
    %v508 = vpop.f32.mrb[0].mxu0
    %v509 = vadd.f32 %v108, %v508
    %v510 = vpop.f32.mrb[0].mxu0
    %v511 = vpop.f32.mrb[0].mxu0
    %v512 = vadd.f32 %v108, %v511
    %v513 = vpop.f32.mrb[0].mxu0
    %514 = vmatprep.mubr.bf16.mxu0 0
    %515 = vmatmul.mubr.bf16.gmra.mrb[0].mxu0 %v323
    %v516 = vpop.f32.mrb[0].mxu0
    %v517 = vadd.f32 %v108, %v516
    %v518 = vpop.f32.mrb[0].mxu0
    %v519 = vpop.f32.mrb[0].mxu0
    %v520 = vadd.f32 %v108, %v519
    %v521 = vpop.f32.mrb[0].mxu0
    %522 = vmatprep.mubr.bf16.mxu0 0
    %523 = vmatmul.mubr.bf16.gmra.mrb[0].mxu0 %v326
    %v524 = vpop.f32.mrb[0].mxu0
    %v525 = vadd.f32 %v108, %v524
    %v526 = vpop.f32.mrb[0].mxu0
    %v527 = vpop.f32.mrb[0].mxu0
    %v528 = vadd.f32 %v108, %v527
    %v529 = vpop.f32.mrb[0].mxu0
    %530 = vmatprep.mubr.bf16.mxu0 0
    %531 = vmatmul.mubr.bf16.gmra.mrb[0].mxu0 %v329
    %v532 = vpop.f32.mrb[0].mxu0
    %v533 = vadd.f32 %v108, %v532
    %v534 = vpop.f32.mrb[0].mxu0
    %v535 = vpop.f32.mrb[0].mxu0
    %v536 = vadd.f32 %v108, %v535
    %v537 = vpop.f32.mrb[0].mxu0
    %538 = vmatprep.mubr.bf16.mxu0 0
    %539 = vmatmul.mubr.bf16.gmra.mrb[0].mxu0 %v332
    %v540 = vpop.f32.mrb[0].mxu0
    %v541 = vadd.f32 %v108, %v540
    %v542 = vpop.f32.mrb[0].mxu0
    %v543 = vpop.f32.mrb[0].mxu0
    %v544 = vadd.f32 %v108, %v543
    %v545 = vpop.f32.mrb[0].mxu0
    %546 = vmatprep.mubr.bf16.mxu0 0
    %547 = vmatmul.mubr.bf16.gmra.mrb[0].mxu0 %v335
    %v548 = vpop.f32.mrb[0].mxu0
    %v549 = vadd.f32 %v108, %v548
    %v550 = vpop.f32.mrb[0].mxu0
    %v551 = vpop.f32.mrb[0].mxu0
    %v552 = vadd.f32 %v108, %v551
    %v553 = vpop.f32.mrb[0].mxu0
    %554 = vmatprep.mubr.bf16.mxu0 0
    %555 = vmatmul.mubr.bf16.gmra.mrb[0].mxu0 %v338
    %v556 = vpop.f32.mrb[0].mxu0
    %v557 = vadd.f32 %v108, %v556
    %v558 = vpop.f32.mrb[0].mxu0
    %v559 = vpop.f32.mrb[0].mxu0
    %v560 = vadd.f32 %v108, %v559
    %v561 = vpop.f32.mrb[0].mxu0
    %562 = vmatprep.mubr.bf16.mxu0 0
    %563 = vmatmul.mubr.bf16.gmra.mrb[0].mxu0 %v341
    %v564 = vpop.f32.mrb[0].mxu0
    %v565 = vadd.f32 %v108, %v564
    %v566 = vpop.f32.mrb[0].mxu0
    %v567 = vpop.f32.mrb[0].mxu0
    %v568 = vadd.f32 %v108, %v567
    %v569 = vpop.f32.mrb[0].mxu0
    %570 = vmatprep.mubr.bf16.mxu0 0
    %571 = vmatmul.mubr.bf16.gmra.mrb[0].mxu0 %v344
    %v572 = vpop.f32.mrb[0].mxu0
    %v573 = vadd.f32 %v108, %v572
    %v574 = vpop.f32.mrb[0].mxu0
    %v575 = vpop.f32.mrb[0].mxu0
    %v576 = vadd.f32 %v108, %v575
    %v577 = vpop.f32.mrb[0].mxu0
    %578 = vmatprep.mubr.bf16.mxu0 0
    %579 = vmatmul.mubr.bf16.gmra.mrb[0].mxu0 %v347
    %v580 = vpop.f32.mrb[0].mxu0
    %v581 = vadd.f32 %v108, %v580
    %v582 = vpop.f32.mrb[0].mxu0
    %v583 = vpop.f32.mrb[0].mxu0
    %v584 = vadd.f32 %v108, %v583
    %v585 = vpop.f32.mrb[0].mxu0
    %586 = vmatprep.mubr.bf16.mxu0 0
    %587 = vmatmul.mubr.bf16.gmra.mrb[0].mxu0 %v350
    %v588 = vpop.f32.mrb[0].mxu0
    %v589 = vadd.f32 %v108, %v588
    %v590 = vpop.f32.mrb[0].mxu0
    %v591 = vpop.f32.mrb[0].mxu0
    %v592 = vadd.f32 %v108, %v591
    %v593 = vpop.f32.mrb[0].mxu0
    %594 = vmatprep.mubr.bf16.mxu0 0
    %595 = vmatmul.mubr.bf16.gmra.mrb[0].mxu0 %v353
    %v596 = vpop.f32.mrb[0].mxu0
    %v597 = vadd.f32 %v108, %v596
    %v598 = vpop.f32.mrb[0].mxu0
    %v599 = vpop.f32.mrb[0].mxu0
    %v600 = vadd.f32 %v108, %v599
    %v601 = vpop.f32.mrb[0].mxu0
    %602 = vmatprep.mubr.bf16.mxu0 0
    %603 = vmatmul.mubr.bf16.gmra.mrb[0].mxu0 %v356
    %v604 = vpop.f32.mrb[0].mxu0
    %v605 = vadd.f32 %v108, %v604
    %v606 = vpop.f32.mrb[0].mxu0
    %v607 = vpop.f32.mrb[0].mxu0
    %v608 = vadd.f32 %v108, %v607
    %v609 = vpop.f32.mrb[0].mxu0
    %610 = vmatprep.mubr.bf16.mxu0 0
    %611 = vmatmul.mubr.bf16.gmra.mrb[0].mxu0 %v359
    %v612 = vpop.f32.mrb[0].mxu0
    %v613 = vadd.f32 %v108, %v612
    %v614 = vpop.f32.mrb[0].mxu0
    %v615 = vpop.f32.mrb[0].mxu0
    %v616 = vadd.f32 %v108, %v615
    %v617 = vpop.f32.mrb[0].mxu0
    %618 = vmatprep.mubr.bf16.mxu0 0
    %619 = vmatmul.mubr.bf16.gmra.mrb[0].mxu0 %v362
    %v620 = vpop.f32.mrb[0].mxu0
    %v621 = vadd.f32 %v108, %v620
    %v622 = vpop.f32.mrb[0].mxu0
    %v623 = vpop.f32.mrb[0].mxu0
    %v624 = vadd.f32 %v108, %v623
    %v625 = vpop.f32.mrb[0].mxu0
    %626 = vmatprep.mubr.bf16.mxu0 0
    %627 = vmatmul.mubr.bf16.gmra.mrb[0].mxu0 %v365
    %v628 = vpop.f32.mrb[0].mxu0
    %v629 = vadd.f32 %v108, %v628
    %v630 = vpop.f32.mrb[0].mxu0
    %v631 = vpop.f32.mrb[0].mxu0
    %v632 = vadd.f32 %v108, %v631
    %v633 = vpop.f32.mrb[0].mxu0
    %634 = vmatprep.mubr.bf16.mxu0 0
    %635 = vmatmul.mubr.bf16.gmra.mrb[0].mxu0 %v368
    %v636 = vpop.f32.mrb[0].mxu0
    %v637 = vadd.f32 %v108, %v636
    %v638 = vpop.f32.mrb[0].mxu0
    %v639 = vpop.f32.mrb[0].mxu0
    %v640 = vadd.f32 %v108, %v639
    %v641 = vpop.f32.mrb[0].mxu0
    %642 = vmatprep.mubr.bf16.mxu0 0
    %643 = vmatmul.mubr.bf16.gmra.mrb[0].mxu0 %v371
    %v644 = vpop.f32.mrb[0].mxu0
    %v645 = vadd.f32 %v108, %v644
    %v646 = vpop.f32.mrb[0].mxu0
    %v647 = vpop.f32.mrb[0].mxu0
    %v648 = vadd.f32 %v108, %v647
    %v649 = vpop.f32.mrb[0].mxu0
    %650 = vmatprep.mubr.bf16.mxu0 0
    %651 = vmatmul.mubr.bf16.gmra.mrb[0].mxu0 %v374
    %v652 = vpop.f32.mrb[0].mxu0
    %v653 = vadd.f32 %v108, %v652
    %v654 = vpop.f32.mrb[0].mxu0
    %v655 = vpop.f32.mrb[0].mxu0
    %v656 = vadd.f32 %v108, %v655
    %v657 = vpop.f32.mrb[0].mxu0
    %658 = vmatprep.mubr.bf16.mxu0 0
    %659 = vmatmul.mubr.bf16.gmra.mrb[0].mxu0 %v377
    %v660 = vpop.f32.mrb[0].mxu0
    %v661 = vadd.f32 %v108, %v660
    %v662 = vpop.f32.mrb[0].mxu0
    %v663 = vpop.f32.mrb[0].mxu0
    %v664 = vadd.f32 %v108, %v663
    %v665 = vpop.f32.mrb[0].mxu0
    %666 = vmatprep.mubr.bf16.mxu0 0
    %667 = vmatmul.mubr.bf16.gmra.mrb[0].mxu0 %v380
    %v668 = vpop.f32.mrb[0].mxu0
    %v669 = vadd.f32 %v108, %v668
    %v670 = vpop.f32.mrb[0].mxu0
    %v671 = vpop.f32.mrb[0].mxu0
    %v672 = vadd.f32 %v108, %v671
    %v673 = vpop.f32.mrb[0].mxu0
    %674 = vdwg.mxu0
    %v675 = vmax.f32 %v421, 0.0
    %v676 = vmax.f32 %v424, 0.0
    %v677 = vmax.f32 %v429, 0.0
    %v678 = vmax.f32 %v432, 0.0
    %v679 = vmax.f32 %v437, 0.0
    %v680 = vmax.f32 %v440, 0.0
    %v681 = vmax.f32 %v445, 0.0
    %v682 = vmax.f32 %v448, 0.0
    %v683 = vmax.f32 %v453, 0.0
    %v684 = vmax.f32 %v456, 0.0
    %v685 = vmax.f32 %v461, 0.0
    %v686 = vmax.f32 %v464, 0.0
    %v687 = vmax.f32 %v469, 0.0
    %v688 = vmax.f32 %v472, 0.0
    %v689 = vmax.f32 %v477, 0.0
    %v690 = vmax.f32 %v480, 0.0
    %v691 = vmax.f32 %v485, 0.0
    %v692 = vmax.f32 %v488, 0.0
    %v693 = vmax.f32 %v493, 0.0
    %v694 = vmax.f32 %v496, 0.0
    %v695 = vmax.f32 %v501, 0.0
    %v696 = vmax.f32 %v504, 0.0
    %v697 = vmax.f32 %v509, 0.0
    %v698 = vmax.f32 %v512, 0.0
    %v699 = vmax.f32 %v517, 0.0
    %v700 = vmax.f32 %v520, 0.0
    %v701 = vmax.f32 %v525, 0.0
    %v702 = vmax.f32 %v528, 0.0
    %v703 = vmax.f32 %v533, 0.0
    %v704 = vmax.f32 %v536, 0.0
    %v705 = vmax.f32 %v541, 0.0
    %v706 = vmax.f32 %v544, 0.0
    %v707 = vmax.f32 %v549, 0.0
    %v708 = vmax.f32 %v552, 0.0
    %v709 = vmax.f32 %v557, 0.0
    %v710 = vmax.f32 %v560, 0.0
    %v711 = vmax.f32 %v565, 0.0
    %v712 = vmax.f32 %v568, 0.0
    %v713 = vmax.f32 %v573, 0.0
    %v714 = vmax.f32 %v576, 0.0
    %v715 = vmax.f32 %v581, 0.0
    %v716 = vmax.f32 %v584, 0.0
    %v717 = vmax.f32 %v589, 0.0
    %v718 = vmax.f32 %v592, 0.0
    %v719 = vmax.f32 %v597, 0.0
    %v720 = vmax.f32 %v600, 0.0
    %v721 = vmax.f32 %v605, 0.0
    %v722 = vmax.f32 %v608, 0.0
    %v723 = vmax.f32 %v613, 0.0
    %v724 = vmax.f32 %v616, 0.0
    %v725 = vmax.f32 %v621, 0.0
    %v726 = vmax.f32 %v624, 0.0
    %v727 = vmax.f32 %v629, 0.0
    %v728 = vmax.f32 %v632, 0.0
    %v729 = vmax.f32 %v637, 0.0
    %v730 = vmax.f32 %v640, 0.0
    %v731 = vmax.f32 %v645, 0.0
    %v732 = vmax.f32 %v648, 0.0
    %v733 = vmax.f32 %v653, 0.0
    %v734 = vmax.f32 %v656, 0.0
    %v735 = vmax.f32 %v661, 0.0
    %v736 = vmax.f32 %v664, 0.0
    %v737 = vmax.f32 %v669, 0.0
    %v738 = vmax.f32 %v672, 0.0
    %v739 = vld [vmem:[%s3] sm:$0xff]
    %v741 = vcombine.high %v739, %v739
    %v743 = vunpack.c.l.s4 1983009808
    %v744 = vunpack.c.0.s8 %v743
    %v745 = vlaneseq
    %v746 = vshrl.u32 %v745, 7
    %v747 = vsub.s32 %v744, %v746
    %v748 = vrot.slane %v739, %v747
    %v750 = vunpack.c.l.s4 1983009808
    %v751 = vunpack.c.0.s8 %v750
    %v752 = vlaneseq
    %v753 = vshrl.u32 %v752, 7
    %v754 = vsub.s32 %v751, %v753
    %v755 = vrot.slane %v741, %v754
    %v756 = vcombine.high %v748, %v748
    %v757 = vcombine.high %v755, %v755
    %762 = vmatprep.subr.mxu0 0.0
    %763 = vmatpush1.msra.mxu0 %v675
    %764 = vmatprep.subr.mxu0 0.0
    %765 = vmatpush1.msra.mxu0 %v676
    %766 = vmatprep.subr.mxu0 0.0
    %767 = vmatpush1.msra.mxu0 %v677
    %768 = vmatprep.subr.mxu0 0.0
    %769 = vmatpush1.msra.mxu0 %v678
    %770 = vmatprep.subr.mxu0 0.0
    %771 = vmatpush1.msra.mxu0 %v679
    %772 = vmatprep.subr.mxu0 0.0
    %773 = vmatpush1.msra.mxu0 %v680
    %774 = vmatprep.subr.mxu0 0.0
    %775 = vmatpush1.msra.mxu0 %v681
    %776 = vmatprep.subr.mxu0 0.0
    %777 = vmatpush1.msra.mxu0 %v682
    %778 = vmatprep.subr.mxu0 0.0
    %779 = vmatpush1.msra.mxu0 %v683
    %780 = vmatprep.subr.mxu0 0.0
    %781 = vmatpush1.msra.mxu0 %v684
    %782 = vmatprep.subr.mxu0 0.0
    %783 = vmatpush1.msra.mxu0 %v685
    %784 = vmatprep.subr.mxu0 0.0
    %785 = vmatpush1.msra.mxu0 %v686
    %786 = vmatprep.subr.mxu0 0.0
    %787 = vmatpush1.msra.mxu0 %v687
    %788 = vmatprep.subr.mxu0 0.0
    %789 = vmatpush1.msra.mxu0 %v688
    %790 = vmatprep.subr.mxu0 0.0
    %791 = vmatpush1.msra.mxu0 %v689
    %792 = vmatprep.subr.mxu0 0.0
    %793 = vmatpush1.msra.mxu0 %v690
    %794 = vmatprep.subr.mxu0 0.0
    %795 = vmatpush1.msra.mxu0 %v691
    %796 = vmatprep.subr.mxu0 0.0
    %797 = vmatpush1.msra.mxu0 %v692
    %798 = vmatprep.subr.mxu0 0.0
    %799 = vmatpush1.msra.mxu0 %v693
    %800 = vmatprep.subr.mxu0 0.0
    %801 = vmatpush1.msra.mxu0 %v694
    %802 = vmatprep.subr.mxu0 0.0
    %803 = vmatpush1.msra.mxu0 %v695
    %804 = vmatprep.subr.mxu0 0.0
    %805 = vmatpush1.msra.mxu0 %v696
    %806 = vmatprep.subr.mxu0 0.0
    %807 = vmatpush1.msra.mxu0 %v697
    %808 = vmatprep.subr.mxu0 0.0
    %809 = vmatpush1.msra.mxu0 %v698
    %810 = vmatprep.subr.mxu0 0.0
    %811 = vmatpush1.msra.mxu0 %v699
    %812 = vmatprep.subr.mxu0 0.0
    %813 = vmatpush1.msra.mxu0 %v700
    %814 = vmatprep.subr.mxu0 0.0
    %815 = vmatpush1.msra.mxu0 %v701
    %816 = vmatprep.subr.mxu0 0.0
    %817 = vmatpush1.msra.mxu0 %v702
    %818 = vmatprep.subr.mxu0 0.0
    %819 = vmatpush1.msra.mxu0 %v703
    %820 = vmatprep.subr.mxu0 0.0
    %821 = vmatpush1.msra.mxu0 %v704
    %822 = vmatprep.subr.mxu0 0.0
    %823 = vmatpush1.msra.mxu0 %v705
    %824 = vmatprep.subr.mxu0 0.0
    %825 = vmatpush1.msra.mxu0 %v706
    %826 = vmatprep.mubr.f32.mxu0 %v756
    %827 = vmatmul.mubr.f32.gmra.mrb[0].mxu0 %v748
    %v828 = vpop.f32.mrb[0].mxu0
    %v829 = vadd.f32 0.0, %v828
    %v830 = vpop.f32.mrb[0].mxu0
    %831 = vdwg.mxu0
    %832 = vmatprep.subr.mxu0 0.0
    %833 = vmatpush1.msra.mxu0 %v707
    %834 = vmatprep.subr.mxu0 0.0
    %835 = vmatpush1.msra.mxu0 %v708
    %836 = vmatprep.subr.mxu0 0.0
    %837 = vmatpush1.msra.mxu0 %v709
    %838 = vmatprep.subr.mxu0 0.0
    %839 = vmatpush1.msra.mxu0 %v710
    %840 = vmatprep.subr.mxu0 0.0
    %841 = vmatpush1.msra.mxu0 %v711
    %842 = vmatprep.subr.mxu0 0.0
    %843 = vmatpush1.msra.mxu0 %v712
    %844 = vmatprep.subr.mxu0 0.0
    %845 = vmatpush1.msra.mxu0 %v713
    %846 = vmatprep.subr.mxu0 0.0
    %847 = vmatpush1.msra.mxu0 %v714
    %848 = vmatprep.subr.mxu0 0.0
    %849 = vmatpush1.msra.mxu0 %v715
    %850 = vmatprep.subr.mxu0 0.0
    %851 = vmatpush1.msra.mxu0 %v716
    %852 = vmatprep.subr.mxu0 0.0
    %853 = vmatpush1.msra.mxu0 %v717
    %854 = vmatprep.subr.mxu0 0.0
    %855 = vmatpush1.msra.mxu0 %v718
    %856 = vmatprep.subr.mxu0 0.0
    %857 = vmatpush1.msra.mxu0 %v719
    %858 = vmatprep.subr.mxu0 0.0
    %859 = vmatpush1.msra.mxu0 %v720
    %860 = vmatprep.subr.mxu0 0.0
    %861 = vmatpush1.msra.mxu0 %v721
    %862 = vmatprep.subr.mxu0 0.0
    %863 = vmatpush1.msra.mxu0 %v722
    %864 = vmatprep.subr.mxu0 0.0
    %865 = vmatpush1.msra.mxu0 %v723
    %866 = vmatprep.subr.mxu0 0.0
    %867 = vmatpush1.msra.mxu0 %v724
    %868 = vmatprep.subr.mxu0 0.0
    %869 = vmatpush1.msra.mxu0 %v725
    %870 = vmatprep.subr.mxu0 0.0
    %871 = vmatpush1.msra.mxu0 %v726
    %872 = vmatprep.subr.mxu0 0.0
    %873 = vmatpush1.msra.mxu0 %v727
    %874 = vmatprep.subr.mxu0 0.0
    %875 = vmatpush1.msra.mxu0 %v728
    %876 = vmatprep.subr.mxu0 0.0
    %877 = vmatpush1.msra.mxu0 %v729
    %878 = vmatprep.subr.mxu0 0.0
    %879 = vmatpush1.msra.mxu0 %v730
    %880 = vmatprep.subr.mxu0 0.0
    %881 = vmatpush1.msra.mxu0 %v731
    %882 = vmatprep.subr.mxu0 0.0
    %883 = vmatpush1.msra.mxu0 %v732
    %884 = vmatprep.subr.mxu0 0.0
    %885 = vmatpush1.msra.mxu0 %v733
    %886 = vmatprep.subr.mxu0 0.0
    %887 = vmatpush1.msra.mxu0 %v734
    %888 = vmatprep.subr.mxu0 0.0
    %889 = vmatpush1.msra.mxu0 %v735
    %890 = vmatprep.subr.mxu0 0.0
    %891 = vmatpush1.msra.mxu0 %v736
    %892 = vmatprep.subr.mxu0 0.0
    %893 = vmatpush1.msra.mxu0 %v737
    %894 = vmatprep.subr.mxu0 0.0
    %895 = vmatpush1.msra.mxu0 %v738
    %896 = vmatprep.mubr.f32.mxu0 %v757
    %897 = vmatmul.mubr.f32.gmra.mrb[0].mxu0 %v755
    %v898 = vpop.f32.mrb[0].mxu0
    %v899 = vadd.f32 %v829, %v898
    %v900 = vpop.f32.mrb[0].mxu0
    %901 = vdwg.mxu0
    %v902 = vpack.c.bf16 %v899, %v899
    %v903 = vld [vmem:[%s4] sm:$0xf]
    %v904 = vld [vmem:[%s5] sm:$0x1]
    %v906 = vlaneseq
    %v907 = vshrl.u32 %v906, 7
    %v908 = vsub.s32 0, %v907
    %v909 = vrot.slane %v904, %v908
    %vm911 = vcmask 64512
    %v913 = vsel %vm911, %v902, 0
    %vm915 = vcmask 1043456
    %v917 = vsel %vm915, %v903, 0
    %919 = vmatprep.subr.bf16.mxu0 0
    %920 = vmatpush1.bf16.msra.mxu0 %v917
    %921 = vmatprep.subr.bf16.mxu0 0
    %922 = vmatpush1.bf16.msra.mxu0 0
    %923 = vmatprep.subr.bf16.mxu0 0
    %924 = vmatpush1.bf16.msra.mxu0 0
    %925 = vmatprep.subr.bf16.mxu0 0
    %926 = vmatpush1.bf16.msra.mxu0 0
    %927 = vmatprep.subr.bf16.mxu0 0
    %928 = vmatpush1.bf16.msra.mxu0 0
    %929 = vmatprep.subr.bf16.mxu0 0
    %930 = vmatpush1.bf16.msra.mxu0 0
    %931 = vmatprep.subr.bf16.mxu0 0
    %932 = vmatpush1.bf16.msra.mxu0 0
    %933 = vmatprep.subr.bf16.mxu0 0
    %934 = vmatpush1.bf16.msra.mxu0 0
    %935 = vmatprep.subr.bf16.mxu0 0
    %936 = vmatpush1.bf16.msra.mxu0 0
    %937 = vmatprep.subr.bf16.mxu0 0
    %938 = vmatpush1.bf16.msra.mxu0 0
    %939 = vmatprep.subr.bf16.mxu0 0
    %940 = vmatpush1.bf16.msra.mxu0 0
    %941 = vmatprep.subr.bf16.mxu0 0
    %942 = vmatpush1.bf16.msra.mxu0 0
    %943 = vmatprep.subr.bf16.mxu0 0
    %944 = vmatpush1.bf16.msra.mxu0 0
    %945 = vmatprep.subr.bf16.mxu0 0
    %946 = vmatpush1.bf16.msra.mxu0 0
    %947 = vmatprep.subr.bf16.mxu0 0
    %948 = vmatpush1.bf16.msra.mxu0 0
    %949 = vmatprep.subr.bf16.mxu0 0
    %950 = vmatpush1.bf16.msra.mxu0 0
    %951 = vmatprep.mubr.bf16.mxu0 0
    %952 = vmatmul.mubr.bf16.gmra.mrb[0].mxu0 %v913
    %v953 = vpop.f32.mrb[0].mxu0
    %v954 = vadd.f32 %v909, %v953
    %v955 = vpop.f32.mrb[0].mxu0
    %v956 = vpop.f32.mrb[0].mxu0
    %v957 = vpop.f32.mrb[0].mxu0
    %958 = vdwg.mxu0
    %v959 = vmax.f32 %v954, 0.0
    %960 = vst [vmem:[#allocation4] sm:$0x3] %v959
    %v961 = vpack.c.bf16 %v959, %v959
    %v962 = vld [vmem:[%s6] sm:$0xf]
    %v963 = vld [vmem:[%s6 + $0x4] sm:$0xf]
    %v964 = vld [vmem:[%s6 + $0x8] sm:$0xf]
    %v965 = vld [vmem:[%s6 + $0xc] sm:$0xf]
    %v966 = vld [vmem:[%s6 + $0x10] sm:$0xf]
    %v967 = vld [vmem:[%s6 + $0x14] sm:$0xf]
    %v968 = vld [vmem:[%s6 + $0x18] sm:$0xf]
    %v969 = vld [vmem:[%s6 + $0x1c] sm:$0xf]
    %v970 = vld [vmem:[%s6 + $0x20] sm:$0xf]
    %v971 = vld [vmem:[%s6 + $0x24] sm:$0xf]
    %v972 = vld [vmem:[%s6 + $0x28] sm:$0xf]
    %v973 = vld [vmem:[%s6 + $0x2c] sm:$0xf]
    %v974 = vld [vmem:[%s6 + $0x30] sm:$0xf]
    %v975 = vld [vmem:[%s6 + $0x34] sm:$0xf]
    %v976 = vld [vmem:[%s6 + $0x38] sm:$0xf]
    %v977 = vld [vmem:[%s6 + $0x3c] sm:$0xf]
    %v978 = vld [vmem:[%s7] sm:$0x1]
    %v980 = vlaneseq
    %v981 = vshrl.u32 %v980, 7
    %v982 = vsub.s32 0, %v981
    %v983 = vrot.slane %v978, %v982
    %v1001 = vunpack.c.l.b16 %v962
    %v1002 = vunpack.c.l.b16 %v963
    %v1003 = vunpack.c.l.b16 %v964
    %v1004 = vunpack.c.l.b16 %v965
    %v1005 = vunpack.c.l.b16 %v966
    %v1006 = vunpack.c.l.b16 %v967
    %v1007 = vunpack.c.l.b16 %v968
    %v1008 = vunpack.c.l.b16 %v969
    %v1009 = vunpack.c.l.b16 %v970
    %v1010 = vunpack.c.l.b16 %v971
    %v1011 = vunpack.c.l.b16 %v972
    %v1012 = vunpack.c.l.b16 %v973
    %v1013 = vunpack.c.l.b16 %v974
    %v1014 = vunpack.c.l.b16 %v975
    %v1015 = vunpack.c.l.b16 %v976
    %v1016 = vunpack.c.l.b16 %v977
    %v1017 = vpack.c.b16 %v1002, %v1001
    %v1018 = vpack.c.b16 %v1004, %v1003
    %v1019 = vpack.c.b16 %v1006, %v1005
    %v1020 = vpack.c.b16 %v1008, %v1007
    %v1021 = vpack.c.b16 %v1010, %v1009
    %v1022 = vpack.c.b16 %v1012, %v1011
    %v1023 = vpack.c.b16 %v1014, %v1013
    %v1024 = vpack.c.b16 %v1016, %v1015
    %1033 = vmatprep.subr.bf16.mxu0 0
    %1034 = vmatpush1.bf16.msra.mxu0 %v1017
    %1035 = vmatprep.subr.bf16.mxu0 0
    %1036 = vmatpush1.bf16.msra.mxu0 %v1018
    %1037 = vmatprep.subr.bf16.mxu0 0
    %1038 = vmatpush1.bf16.msra.mxu0 %v1019
    %1039 = vmatprep.subr.bf16.mxu0 0
    %1040 = vmatpush1.bf16.msra.mxu0 %v1020
    %1041 = vmatprep.subr.bf16.mxu0 0
    %1042 = vmatpush1.bf16.msra.mxu0 %v1021
    %1043 = vmatprep.subr.bf16.mxu0 0
    %1044 = vmatpush1.bf16.msra.mxu0 %v1022
    %1045 = vmatprep.subr.bf16.mxu0 0
    %1046 = vmatpush1.bf16.msra.mxu0 %v1023
    %1047 = vmatprep.subr.bf16.mxu0 0
    %1048 = vmatpush1.bf16.msra.mxu0 %v1024
    %1049 = vmatprep.subr.bf16.mxu0 0
    %1050 = vmatpush1.bf16.msra.mxu0 0
    %1051 = vmatprep.subr.bf16.mxu0 0
    %1052 = vmatpush1.bf16.msra.mxu0 0
    %1053 = vmatprep.subr.bf16.mxu0 0
    %1054 = vmatpush1.bf16.msra.mxu0 0
    %1055 = vmatprep.subr.bf16.mxu0 0
    %1056 = vmatpush1.bf16.msra.mxu0 0
    %1057 = vmatprep.subr.bf16.mxu0 0
    %1058 = vmatpush1.bf16.msra.mxu0 0
    %1059 = vmatprep.subr.bf16.mxu0 0
    %1060 = vmatpush1.bf16.msra.mxu0 0
    %1061 = vmatprep.subr.bf16.mxu0 0
    %1062 = vmatpush1.bf16.msra.mxu0 0
    %1063 = vmatprep.subr.bf16.mxu0 0
    %1064 = vmatpush1.bf16.msra.mxu0 0
    %1065 = vmatprep.mubr.bf16.mxu0 0
    %1066 = vmatmul.mubr.bf16.gmra.mrb[0].mxu0 %v961
    %v1067 = vpop.f32.mrb[0].mxu0
    %v1068 = vadd.f32 %v983, %v1067
    %v1069 = vpop.f32.mrb[0].mxu0
    %v1070 = vpop.f32.mrb[0].mxu0
    %v1071 = vpop.f32.mrb[0].mxu0
    %1072 = vdwg.mxu0
    %1073 = vst [vmem:[#allocation2] sm:$0x3] %v1068
    // Predicated region
    $region34: #{tpu_custom_call.1} parent=1 // pred_check
      _
    $region35: #{tpu_custom_call.1} parent=1 // pred_check_branch
      %1075 = sbr.rel (0) target = $region37
    $region36: #{tpu_custom_call.1} parent=1 // pred_region
      %s1077 = ssub.s32 32, 32
      %1078 = vsyncadd [#allocation3], %s1077
      %s1080 = sshll.u32 [#allocation2], 4
      %s1081 = int_to_ptr.vmem [resolvable:$true] %s1080
      %1083 = dma.vmem_to_hbm [thread:$0]  %s1081, 32, %s8, [#allocation3]
    $region37: #{tpu_custom_call.1} parent=1 // pred_fallthru
      _
    // Predicated region
    $region38: #{tpu_custom_call.1} parent=1 // pred_check
      _
    $region39: #{tpu_custom_call.1} parent=1 // pred_check_branch
      %1085 = sbr.rel (0) target = $region41
    $region40: #{tpu_custom_call.1} parent=1 // pred_region
      %s1087 = ssub.s32 32, 32
      %1088 = vsyncadd [#allocation5], %s1087
      %s1090 = sshll.u32 [#allocation4], 4
      %s1091 = int_to_ptr.vmem [resolvable:$true] %s1090
      %1093 = dma.vmem_to_hbm [thread:$0]  %s1091, 32, %s9, [#allocation5]
    $region41: #{tpu_custom_call.1} parent=1 // pred_fallthru
      _
    // Predicated region
    $region42: #{tpu_custom_call.1} parent=1 // pred_check
      _
    $region43: #{tpu_custom_call.1} parent=1 // pred_check_branch
      %1095 = sbr.rel (0) target = $region45
    $region44: #{tpu_custom_call.1} parent=1 // pred_region
      %1096 = dma.done [#allocation3], 32
    $region45: #{tpu_custom_call.1} parent=1 // pred_fallthru
      _
    // Predicated region
    $region46: #{tpu_custom_call.1} parent=1 // pred_check
      _
    $region47: #{tpu_custom_call.1} parent=1 // pred_check_branch
      %1098 = sbr.rel (0) target = $region49
    $region48: #{tpu_custom_call.1} parent=1 // pred_region
      %1099 = dma.done [#allocation5], 32
    $region49: #{tpu_custom_call.1} parent=1 // pred_fallthru
      _
    %1100 = vsyncpa [#allocation3], 1
    %1101 = vsyncpa [#allocation5], 1

</llo_original>
